<compile_context>
chip_gen: v5e
topology: v5e:2x2
jax: 0.10.0
libtpu: 0.0.40
codegen_flags: <defaults>
</compile_context>

<pallas_src>
import jax
import jax.numpy as jnp
from jax.experimental import pallas as pl
from jax.experimental.pallas import tpu as pltpu


# ---------------------------------------------------------------------------
# Kernels
# ---------------------------------------------------------------------------

def _upsample_kernel_blockdiag(x_ref, w_ref, b_ref, o_ref):
    # x_ref: (1, R, P*C)      R = tH*W//P, each row = P adjacent source pixels
    # w_ref: (P*C, 2*P*C)     block-diagonal duplicated 1x1-conv weight
    # b_ref: (1, 2*P*C)       bias tiled 2*P times
    # o_ref: (1, tH, 2, W//P, 2*P*C)
    _, tH, _, WP, CL = o_ref.shape
    y = jnp.dot(x_ref[0], w_ref[...], preferred_element_type=jnp.float32)
    y = (y + b_ref[...]).astype(o_ref.dtype)          # (R, 2*P*C)
    y = y.reshape(tH, WP, CL)                          # leading-dim split only
    # Nearest-neighbour row duplication: output rows 2h and 2h+1 are identical.
    o_ref[0, :, 0] = y
    o_ref[0, :, 1] = y


def _upsample_kernel_split(x_ref, w_ref, b_ref, o_ref):
    # Large-C path: no zero-padded weight.  Two matmuls into lane halves.
    # x_ref: (1, R, 2*C)      R = tH*W//2, each row = a pair of source pixels
    # w_ref: (C, 2*C)         [wm | wm]
    # b_ref: (1, 2*C)
    # o_ref: (1, tH, 2, W//2, 4*C)
    _, tH, _, W2, C4 = o_ref.shape
    C2 = C4 // 2
    C = C2 // 2
    x = x_ref[0]
    w = w_ref[...]
    b = b_ref[...]
    ya = (jnp.dot(x[:, :C], w, preferred_element_type=jnp.float32) + b)
    yb = (jnp.dot(x[:, C:], w, preferred_element_type=jnp.float32) + b)
    ya = ya.astype(o_ref.dtype).reshape(tH, W2, C2)
    yb = yb.astype(o_ref.dtype).reshape(tH, W2, C2)
    # 2C is a multiple of 128 on this path -> half-slab stores stay unmasked.
    o_ref[0, :, 0, :, :C2] = ya
    o_ref[0, :, 1, :, :C2] = ya
    o_ref[0, :, 0, :, C2:] = yb
    o_ref[0, :, 1, :, C2:] = yb


# ---------------------------------------------------------------------------
# Parameter preparation (hoisted out of the per-call wrapper)
# ---------------------------------------------------------------------------

def prepare_upsample_params(conv_weight, conv_bias, W):
    """Build the duplicated 1x1-conv weight/bias once (parameter-setup time).

    conv_weight: (C_out, C_in, 1, 1) PyTorch Conv2d layout, conv_bias: (C_out,)
    """
    C_out, C_in, kh, kw = conv_weight.shape
    assert C_out == C_in and kh == 1 and kw == 1, "expect square 1x1 conv"
    C = C_in
    wm = jnp.transpose(conv_weight[:, :, 0, 0])           # (C_in, C_out)
    wdup = jnp.concatenate([wm, wm], axis=1)               # (C, 2C): cols [p, p]

    if C >= 64 and (2 * C) % 128 == 0:
        # Large C: skip the 75%-zero block-diagonal weight (halves weight
        # HBM/VMEM footprint and MXU K-fill); kernel does two (C,2C) matmuls.
        mode, P = "split", 2
        w = wdup
        b = jnp.tile(conv_bias, 2).reshape(1, 2 * C)
    else:
        # Small C: pack P adjacent pixels per matmul row so the input is
        # 128-lane dense -- but never shrink the output sublane dim (W//P)
        # below a multiple of 8 (stores are 4x the input traffic).
        mode, P = "blockdiag", 2
        while P * C < 128 and W % (2 * P) == 0 and (W // (2 * P)) % 8 == 0:
            P *= 2
        zeros = jnp.zeros((C, 2 * C), wm.dtype)
        rows = [jnp.concatenate([wdup if k == j else zeros for k in range(P)],
                                axis=1) for j in range(P)]
        w = jnp.concatenate(rows, axis=0)                   # (P*C, 2*P*C)
        b = jnp.tile(conv_bias, 2 * P).reshape(1, 2 * P * C)

    return dict(mode=mode, P=P, C=C, w=w, b=b)


# ---------------------------------------------------------------------------
# Adaptive row tiling
# ---------------------------------------------------------------------------

def _pick_row_tile(B, H, row_out_bytes, target_bytes=1 << 20, min_steps=4):
    """Largest divisor of H whose per-step output stays under `target_bytes`,
    shrunk (when possible) so the grid has >= `min_steps` steps (v7x: 2 TCs x
    >=2 pipeline steps each).  The byte cap keeps the double-buffered working
    set far below v7x's 64 MiB VMEM at production shapes."""
    divisors = [d for d in range(1, H + 1) if H % d == 0]
    fitting = [d for d in divisors if d * row_out_bytes <= target_bytes] or [1]
    tH = fitting[-1]
    while B * (H // tH) < min_steps:
        smaller = [d for d in fitting if d < tH]
        if not smaller:
            break
        tH = smaller[-1]
    return tH


# ---------------------------------------------------------------------------
# Wrapper
# ---------------------------------------------------------------------------

def upsample_pallas(x, params, out_dtype=None):
    """x: (B, H, W, C).  Returns (B, 2H, 2W, C) -- matches UpSample.forward.

    out_dtype: optional narrower store dtype (e.g. jnp.bfloat16).  Matmul
    accumulation stays f32; only the final store is cast.
    """
    B, H, W, C = x.shape
    assert C == params["C"], "params built for a different embed_dim"
    P = params["P"]
    mode = params["mode"]
    assert W % 2 == 0 and W % P == 0, "W must be even (and divisible by P)"
    out_dtype = jnp.dtype(x.dtype if out_dtype is None else out_dtype)

    w, b = params["w"], params["b"]
    WP = W // P
    CL = 2 * P * C                                   # output lane width

    # --- adaptive row tiling: grid = (B, H // tH) --------------------------
    row_out_bytes = 4 * W * C * out_dtype.itemsize   # 2 dup rows * 2W px * C
    tH = _pick_row_tile(B, H, row_out_bytes)
    if tH != H and (tH * WP) % 8 != 0:
        tH = H                                       # keep input sublane dim well formed
    n_row = H // tH
    R = tH * WP                                      # matmul rows per step

    # Pair/pack adjacent pixels along the lane axis in the wrapper (metadata
    # only) so the kernel does no lane-crossing reshape of its input.
    x2 = x.reshape(B, (H * W) // P, P * C)

    kernel = _upsample_kernel_split if mode == "split" else _upsample_kernel_blockdiag

    if mode == "split":
        flops = 2 * 2 * B * (H * W // 2) * C * (2 * C)
    else:
        flops = 2 * B * (H * W // P) * (P * C) * (2 * P * C)
    out_elems = B * 4 * H * W * C
    cost = pl.CostEstimate(
        flops=flops,
        transcendentals=0,
        bytes_accessed=(x.size * x.dtype.itemsize
                        + w.size * w.dtype.itemsize
                        + b.size * b.dtype.itemsize
                        + out_elems * out_dtype.itemsize),
    )

    # Deeper input prefetch only when there are enough row tiles for it to
    # matter (input is ~1/4 of the writeback traffic).
    if n_row >= 3:
        x_spec = pl.BlockSpec((1, R, P * C), lambda bi, ri: (bi, ri, 0),
                              pipeline_mode=pl.Buffered(3))
    else:
        x_spec = pl.BlockSpec((1, R, P * C), lambda bi, ri: (bi, ri, 0))

    out = pl.pallas_call(
        kernel,
        out_shape=jax.ShapeDtypeStruct((B, H, 2, WP, CL), out_dtype),
        grid_spec=pltpu.PrefetchScalarGridSpec(
            num_scalar_prefetch=0,
            grid=(B, n_row),
            in_specs=[
                x_spec,
                pl.BlockSpec(w.shape, lambda bi, ri: (0, 0)),
                pl.BlockSpec(b.shape, lambda bi, ri: (0, 0)),
            ],
            out_specs=pl.BlockSpec((1, tH, 2, WP, CL),
                                   lambda bi, ri: (bi, ri, 0, 0, 0)),
        ),
        compiler_params=pltpu.CompilerParams(
            dimension_semantics=("parallel", "arbitrary")),
        cost_estimate=cost,
    )(x2, w, b)

    # Row-major-compatible reshape to the module's (B, 2H, 2W, C) output.
    return out.reshape(B, 2 * H, 2 * W, C)


def upsample_ref(x, conv_weight, conv_bias):
    """Pure-JAX reference mirroring the torch order: upsample -> 1x1 conv."""
    xu = jnp.repeat(jnp.repeat(x, 2, axis=1), 2, axis=2)   # nearest 2x
    w = conv_weight[:, :, 0, 0]                             # (C_out, C_in)
    return jnp.einsum('bhwc,dc->bhwd', xu, w) + conv_bias


if __name__ == "__main__":
    key = jax.random.PRNGKey(0)
    k_x, k_w, k_b, k_x2, k_w2, k_b2 = jax.random.split(key, 6)

    # --- small-C path (block-diagonal weight), embed_dim = 32 ---------------
    B, H, W, C = 2, 16, 16, 32
    x = jax.random.normal(k_x, (B, H, W, C), jnp.float32)
    conv_weight = jax.random.normal(k_w, (C, C, 1, 1), jnp.float32) / jnp.sqrt(C)
    conv_bias = jax.random.normal(k_b, (C,), jnp.float32) * 0.01

    params = prepare_upsample_params(conv_weight, conv_bias, W)   # hoisted, once
    out = jax.block_until_ready(upsample_pallas(x, params))
    ref = upsample_ref(x, conv_weight, conv_bias)
    assert out.shape == (B, 2 * H, 2 * W, C), out.shape
    assert jnp.allclose(out, ref, atol=1e-5, rtol=1e-5), "f32 mismatch vs reference"

    # bf16 writeback option (f32 accumulation, bf16 store).
    out_bf16 = jax.block_until_ready(
        upsample_pallas(x, params, out_dtype=jnp.bfloat16))
    assert out_bf16.dtype == jnp.bfloat16
    assert jnp.allclose(out_bf16.astype(jnp.float32), ref, atol=5e-2, rtol=5e-2), \
        "bf16 mismatch vs reference"

    # --- large-C path (split weight: two (C,2C) matmuls into lane halves) ---
    B2, H2, W2, C2 = 2, 8, 16, 64
    x_l = jax.random.normal(k_x2, (B2, H2, W2, C2), jnp.float32)
    conv_w_l = jax.random.normal(k_w2, (C2, C2, 1, 1), jnp.float32) / jnp.sqrt(C2)
    conv_b_l = jax.random.normal(k_b2, (C2,), jnp.float32) * 0.01
    params_l = prepare_upsample_params(conv_w_l, conv_b_l, W2)
    assert params_l["mode"] == "split"
    out_l = jax.block_until_ready(upsample_pallas(x_l, params_l))
    ref_l = upsample_ref(x_l, conv_w_l, conv_b_l)
    assert out_l.shape == (B2, 2 * H2, 2 * W2, C2)
    assert jnp.allclose(out_l, ref_l, atol=1e-4, rtol=1e-4), "split-path mismatch"

    print("KERNEL_OK")
</pallas_src>

<mosaic_0001>
module attributes {stable_mosaic.version = 11 : i64} {
  func.func @_upsample_kernel_blockdiag(%arg0: i32, %arg1: i32, %arg2: memref<1x64x64xf32, #tpu.memory_space<vmem>>, %arg3: memref<64x128xf32, #tpu.memory_space<vmem>>, %arg4: memref<1x128xf32, #tpu.memory_space<vmem>>, %arg5: memref<1x8x2x8x128xf32, #tpu.memory_space<vmem>>) attributes {dimension_semantics = [#tpu.dimension_semantics<parallel>, #tpu.dimension_semantics<arbitrary>], iteration_bounds = array<i64: 2, 2>, scalar_prefetch = 0 : i64, scratch_operands = 0 : i64, tpu.core_type = #tpu.core_type<tc>, window_params = [{transform_indices = @transform_0, window_bounds = array<i64: 1, 64, 64>}, {pipeline_mode = #tpu.pipeline_mode<synchronous>, transform_indices = @transform_1, window_bounds = array<i64: 64, 128>}, {pipeline_mode = #tpu.pipeline_mode<synchronous>, transform_indices = @transform_2, window_bounds = array<i64: 1, 128>}, {transform_indices = @transform_3, window_bounds = array<i64: 1, 8, 2, 8, 128>}]} {
    %c0 = arith.constant 0 : index
    %c0_0 = arith.constant 0 : index
    %c0_1 = arith.constant 0 : index
    %0 = vector.load %arg2[%c0, %c0_0, %c0_1] : memref<1x64x64xf32, #tpu.memory_space<vmem>>, vector<1x64x64xf32>
    %1 = vector.shape_cast %0 : vector<1x64x64xf32> to vector<64x64xf32>
    %c0_2 = arith.constant 0 : index
    %c0_3 = arith.constant 0 : index
    %2 = vector.load %arg3[%c0_2, %c0_3] : memref<64x128xf32, #tpu.memory_space<vmem>>, vector<64x128xf32>
    %cst = arith.constant dense<0.000000e+00> : vector<64x128xf32>
    %3 = tpu.matmul %1, %2, %cst {dimension_numbers = #tpu.dot_dimension_numbers<[1], [0], [0], [1], [0, 0, 1, 1], [], []>} : vector<64x64xf32>, vector<64x128xf32>, vector<64x128xf32> -> vector<64x128xf32>
    %c0_4 = arith.constant 0 : index
    %c0_5 = arith.constant 0 : index
    %4 = vector.load %arg4[%c0_4, %c0_5] : memref<1x128xf32, #tpu.memory_space<vmem>>, vector<1x128xf32>
    %5 = vector.broadcast %4 : vector<1x128xf32> to vector<64x128xf32>
    %6 = arith.addf %3, %5 : vector<64x128xf32>
    %7 = vector.shape_cast %6 : vector<64x128xf32> to vector<8x8x128xf32>
    %c0_6 = arith.constant 0 : index
    %c0_7 = arith.constant 0 : index
    %c0_8 = arith.constant 0 : index
    %c0_9 = arith.constant 0 : index
    %c0_10 = arith.constant 0 : index
    %8 = vector.load %arg5[%c0_6, %c0_7, %c0_8, %c0_9, %c0_10] : memref<1x8x2x8x128xf32, #tpu.memory_space<vmem>>, vector<1x8x1x8x128xf32>
    %9 = vector.shape_cast %8 : vector<1x8x1x8x128xf32> to vector<8x8x128xf32>
    %10 = vector.shape_cast %7 : vector<8x8x128xf32> to vector<1x8x1x8x128xf32>
    tpu.vector_store %arg5[%c0_6, %c0_7, %c0_8, %c0_9, %c0_10], %10 {strides = array<i32>} : memref<1x8x2x8x128xf32, #tpu.memory_space<vmem>>, vector<1x8x1x8x128xf32>,
    %c0_11 = arith.constant 0 : index
    %c0_12 = arith.constant 0 : index
    %c1 = arith.constant 1 : index
    %c0_13 = arith.constant 0 : index
    %c0_14 = arith.constant 0 : index
    %11 = vector.load %arg5[%c0_11, %c0_12, %c1, %c0_13, %c0_14] : memref<1x8x2x8x128xf32, #tpu.memory_space<vmem>>, vector<1x8x1x8x128xf32>
    %12 = vector.shape_cast %11 : vector<1x8x1x8x128xf32> to vector<8x8x128xf32>
    %13 = vector.shape_cast %7 : vector<8x8x128xf32> to vector<1x8x1x8x128xf32>
    tpu.vector_store %arg5[%c0_11, %c0_12, %c1, %c0_13, %c0_14], %13 {strides = array<i32>} : memref<1x8x2x8x128xf32, #tpu.memory_space<vmem>>, vector<1x8x1x8x128xf32>,
    return
  }
  func.func @transform_0(%arg0: i32, %arg1: i32) -> (i32, i32, i32) {
    %c0_i32 = arith.constant 0 : i32
    %c0_i32_0 = arith.constant 0 : i32
    return %arg0, %arg1, %c0_i32 : i32, i32, i32
  }
  func.func @transform_1(%arg0: i32, %arg1: i32) -> (i32, i32) {
    %c0_i32 = arith.constant 0 : i32
    %c0_i32_0 = arith.constant 0 : i32
    %c0_i32_1 = arith.constant 0 : i32
    return %c0_i32, %c0_i32_0 : i32, i32
  }
  func.func @transform_2(%arg0: i32, %arg1: i32) -> (i32, i32) {
    %c0_i32 = arith.constant 0 : i32
    %c0_i32_0 = arith.constant 0 : i32
    %c0_i32_1 = arith.constant 0 : i32
    return %c0_i32, %c0_i32_0 : i32, i32
  }
  func.func @transform_3(%arg0: i32, %arg1: i32) -> (i32, i32, i32, i32, i32) {
    %c0_i32 = arith.constant 0 : i32
    %c0_i32_0 = arith.constant 0 : i32
    %c0_i32_1 = arith.constant 0 : i32
    %c0_i32_2 = arith.constant 0 : i32
    return %arg0, %arg1, %c0_i32, %c0_i32_0, %c0_i32_1 : i32, i32, i32, i32, i32
  }
}

</mosaic_0001>

<llo_original>
// kernel: tpu_custom_call.1
$region0: #{tpu_custom_call.1}
  #allocation0 [shape = 'u32[]', space=smem, size = 0x4, offset = 0x4, fixed_abs, tag = 'smem constant byte address 0x4 - core index']
  #allocation1 [shape = 'u32[72,128]{1,0:T(1,128)}', space=vmem, size = 0x9000, scoped, tag = 'internal scratch']
  %s0 = inlined_call_operand.vmem [shape: f32[2,128,64], index: 0, kind: input, shape index: {}]
  %s1 = inlined_call_operand.vmem [shape: f32[64,128], index: 1, kind: input, shape index: {}]
  %s2 = inlined_call_operand.vmem [shape: f32[1,128], index: 2, kind: input, shape index: {}]
  %s3 = inlined_call_operand.hbm [shape: f32[2,16,2,8,128], index: 3, kind: output, shape index: {}]
  %s4 = sld [smem:[#allocation0]]
  $region45: #{tpu_custom_call.1} parent=0
    _
  %s6 = ssub.s32 1, %s4
  %s7 = scalar_select 0, %s6, %s4
  $region1: #{tpu_custom_call.1} parent=0
    #allocation2 [shape = 'u8[131072]{0}', space=vmem, size = 0x20000, scoped, tag = 'output window, operand 0']
    #allocation3 [shape = 's32[2]{0}', space=sflag, size = 0x8, scoped, tag = 'scoped memory for tpu_custom_call.1']
    %8 = vsyncpa [#allocation3], 0
    %s9 = scalar_lea.sflag [#allocation3], 1
    %10 = vsyncpa %s9, 0
    loop: start=0, step=1, limit=6
    $region2: #{tpu_custom_call.1} parent=1 // loop_pre_header
      _
    $region3: #{tpu_custom_call.1} parent=1 // loop_header
      %s12 = sphi 0, %s16
      %p13 = scmp.ge.s32.totalorder %s12, 6
      %s19 = sphi 0, %s31
      %s20 = sphi 0, %s27
      %s21 = sphi 0, %s19
      %s22 = sphi 0, %s20
      %s23 = sphi 0, %s21
      %s24 = sphi 0, %s22
      %s36 = sphi 0, %s38
      %s39 = sphi 0, %s36
      %s40 = sphi 0, %s39
      %s56 = sphi 0, %s40
      %s60 = sphi 0, %s60
      %s62 = sphi 0, %s60
      %s63 = sphi 0, %s62
      %s77 = sphi 0, %s63
      %s81 = sphi 0, %s81
      %s83 = sphi 0, %s81
      %s84 = sphi 0, %s83
      %s98 = sphi 0, %s84
      %s106 = sphi 0, %s108
      %s109 = sphi 0, %s106
      %s110 = sphi 0, %s109
      %s126 = sphi 0, %s110
    $region4: #{tpu_custom_call.1} parent=1 // loop_header_branch
      %15 = sbr.rel (%p13) target = $region8
    $region5: #{tpu_custom_call.1} parent=1 // loop_body
      %s17 = ssub.s32 %s12, 1
      %s18 = ssub.s32 %s12, 2
      %s25 = sadd.s32 1, %s20
      %p26 = scmp.ge.s32.totalorder %s25, 2
      %s27 = scalar_select %p26, 0, %s25
      %s28 = sadd.s32 1, %s19
      %s29 = scalar_select %p26, %s28, %s19
      %p30 = scmp.ge.s32.totalorder %s29, 2
      %s31 = scalar_select %p30, 0, %s29
      %s32 = ssub.s32 %s19, %s31
      %s33 = ssub.s32 %s20, %s27
      %s34 = sor.u32 %s32, %s33
      %p35 = scmp.eq.s32.totalorder %s34, 0
      %s37 = sadd.s32 %s36, 1
      %s38 = scalar_select %p35, %s36, %s37
      %p41 = pneg %p35
      %p42 = scmp.eq.s32.totalorder %s12, 3
      %p43 = por %p41, %p42
      %p44 = scmp.ne.s32.totalorder %s36, %s39
      %p45 = scmp.eq.s32.totalorder %s12, 0
      %p46 = por %p44, %p45
      %p47 = scmp.ne.s32.totalorder %s36, %s39
      %p48 = scmp.eq.s32.totalorder %s17, 3
      %p49 = por %p47, %p48
      %p50 = scmp.ne.s32.totalorder %s39, %s40
      %p51 = scmp.eq.s32.totalorder %s17, 0
      %p52 = por %p50, %p51
      %p53 = scmp.ne.s32.totalorder %s39, %s40
      %p54 = scmp.eq.s32.totalorder %s18, 3
      %p55 = por %p53, %p54
      %p57 = scmp.ne.s32.totalorder %s40, %s56
      %p58 = scmp.eq.s32.totalorder %s18, 0
      %p59 = por %p57, %p58
      %s61 = sadd.s32 %s60, 1
      %p64 = scmp.eq.s32.totalorder %s12, 3
      %p65 = scmp.ne.s32.totalorder %s60, %s62
      %p66 = scmp.eq.s32.totalorder %s12, 0
      %p67 = por %p65, %p66
      %p68 = scmp.ne.s32.totalorder %s60, %s62
      %p69 = scmp.eq.s32.totalorder %s17, 3
      %p70 = por %p68, %p69
      %p71 = scmp.ne.s32.totalorder %s62, %s63
      %p72 = scmp.eq.s32.totalorder %s17, 0
      %p73 = por %p71, %p72
      %p74 = scmp.ne.s32.totalorder %s62, %s63
      %p75 = scmp.eq.s32.totalorder %s18, 3
      %p76 = por %p74, %p75
      %p78 = scmp.ne.s32.totalorder %s63, %s77
      %p79 = scmp.eq.s32.totalorder %s18, 0
      %p80 = por %p78, %p79
      %s82 = sadd.s32 %s81, 1
      %p85 = scmp.eq.s32.totalorder %s12, 3
      %p86 = scmp.ne.s32.totalorder %s81, %s83
      %p87 = scmp.eq.s32.totalorder %s12, 0
      %p88 = por %p86, %p87
      %p89 = scmp.ne.s32.totalorder %s81, %s83
      %p90 = scmp.eq.s32.totalorder %s17, 3
      %p91 = por %p89, %p90
      %p92 = scmp.ne.s32.totalorder %s83, %s84
      %p93 = scmp.eq.s32.totalorder %s17, 0
      %p94 = por %p92, %p93
      %p95 = scmp.ne.s32.totalorder %s83, %s84
      %p96 = scmp.eq.s32.totalorder %s18, 3
      %p97 = por %p95, %p96
      %p99 = scmp.ne.s32.totalorder %s84, %s98
      %p100 = scmp.eq.s32.totalorder %s18, 0
      %p101 = por %p99, %p100
      %s102 = ssub.s32 %s19, %s31
      %s103 = ssub.s32 %s20, %s27
      %s104 = sor.u32 %s102, %s103
      %p105 = scmp.eq.s32.totalorder %s104, 0
      %s107 = sadd.s32 %s106, 1
      %s108 = scalar_select %p105, %s106, %s107
      %p111 = pneg %p105
      %p112 = scmp.eq.s32.totalorder %s12, 3
      %p113 = por %p111, %p112
      %p114 = scmp.ne.s32.totalorder %s106, %s109
      %p115 = scmp.eq.s32.totalorder %s12, 0
      %p116 = por %p114, %p115
      %p117 = scmp.ne.s32.totalorder %s106, %s109
      %p118 = scmp.eq.s32.totalorder %s17, 3
      %p119 = por %p117, %p118
      %p120 = scmp.ne.s32.totalorder %s109, %s110
      %p121 = scmp.eq.s32.totalorder %s17, 0
      %p122 = por %p120, %p121
      %p123 = scmp.ne.s32.totalorder %s109, %s110
      %p124 = scmp.eq.s32.totalorder %s18, 3
      %p125 = por %p123, %p124
      %p127 = scmp.ne.s32.totalorder %s110, %s126
      %p128 = scmp.eq.s32.totalorder %s18, 0
      %p129 = por %p127, %p128
      %p130 = scmp.le.s32.totalorder 1, %s12
      %p131 = scmp.lt.s32.totalorder %s12, 5
      %p132 = pnand %p130, %p131
      %p133 = pneg %p132
      // Predicated region
      $region9: #{tpu_custom_call.1} parent=5 // pred_check
        _
      $region10: #{tpu_custom_call.1} parent=5 // pred_check_branch
        %135 = sbr.rel (%p132) target = $region12
      $region11: #{tpu_custom_call.1} parent=5 // pred_region
        %s136 = ssub.s32 %s12, 1
        // Predicated region
        $region13: #{tpu_custom_call.1} parent=11 // pred_check
          %p137 = pneg %p73
        $region14: #{tpu_custom_call.1} parent=11 // pred_check_branch
          %139 = sbr.rel (%p137) target = $region16
        $region15: #{tpu_custom_call.1} parent=11 // pred_region
          _
        $region16: #{tpu_custom_call.1} parent=11 // pred_fallthru
          _
        // Predicated region
        $region17: #{tpu_custom_call.1} parent=11 // pred_check
          %p140 = pneg %p94
        $region18: #{tpu_custom_call.1} parent=11 // pred_check_branch
          %142 = sbr.rel (%p140) target = $region20
        $region19: #{tpu_custom_call.1} parent=11 // pred_region
          _
        $region20: #{tpu_custom_call.1} parent=11 // pred_fallthru
          _
      $region12: #{tpu_custom_call.1} parent=5 // pred_fallthru
        _
      %p143 = scmp.lt.s32.totalorder %s12, 4
      // Predicated region
      $region21: #{tpu_custom_call.1} parent=5 // pred_check
        %p144 = pneg %p143
      $region22: #{tpu_custom_call.1} parent=5 // pred_check_branch
        %146 = sbr.rel (%p144) target = $region24
      $region23: #{tpu_custom_call.1} parent=5 // pred_region
        // Predicated region
        $region25: #{tpu_custom_call.1} parent=23 // pred_check
          %p147 = pneg %p46
        $region26: #{tpu_custom_call.1} parent=23 // pred_check_branch
          %149 = sbr.rel (%p147) target = $region28
        $region27: #{tpu_custom_call.1} parent=23 // pred_region
          %s150 = smul.u32 8, %s20
          %p151 = scmp.lt.s32.totalorder %s19, 1
          %s152 = scalar_select %p151, %s19, 1
          %p153 = scmp.lt.s32.totalorder %s150, 15
          %s154 = scalar_select %p153, %s150, 15
          %s155 = smul.addr %s152, 16
          %s156 = sadd.s32 %s154, %s155
          %s157 = smul.addr %s156, 8
          %s158 = scalar_lea.vmem %s0, %s157
          %s159 = smul.u32 8, %s20
        $region28: #{tpu_custom_call.1} parent=23 // pred_fallthru
          _
      $region24: #{tpu_custom_call.1} parent=5 // pred_fallthru
        _
      %p160 = scmp.le.s32.totalorder 1, %s12
      %p161 = scmp.lt.s32.totalorder %s12, 5
      %p162 = pnand %p160, %p161
      %p163 = pneg %p162
      // Predicated region
      $region29: #{tpu_custom_call.1} parent=5 // pred_check
        _
      $region30: #{tpu_custom_call.1} parent=5 // pred_check_branch
        %165 = sbr.rel (%p162) target = $region32
      $region31: #{tpu_custom_call.1} parent=5 // pred_region
        %s166 = ssub.s32 %s12, 1
        %s167 = smul.u32 8, %s22
        %p168 = scmp.lt.s32.totalorder %s21, 1
        %s169 = scalar_select %p168, %s21, 1
        %p170 = scmp.lt.s32.totalorder %s167, 15
        %s171 = scalar_select %p170, %s167, 15
        %s172 = smul.addr %s169, 16
        %s173 = sadd.s32 %s171, %s172
        %s174 = smul.addr %s173, 8
        %s175 = scalar_lea.vmem %s0, %s174
        %p176 = pneg %p52
        %p177 = pneg %p49
        %p178 = pneg %p73
        %p179 = pneg %p70
        %p180 = pneg %p94
        %p181 = pneg %p91
        %p182 = pneg %p122
        %p183 = pneg %p119
        %s184 = sand.u32 %s109, 1
        %s185 = scalar_lea.sflag [#allocation3], %s184
        %s186 = sand.u32 %s109, 1
        %s187 = smul.addr %s186, 128
        %s188 = scalar_lea.vmem [#allocation2], %s187
        %s189 = smul.u32 8, %s22
        %p190 = scmp.lt.s32.totalorder %s21, 1
        %s191 = scalar_select %p190, %s21, 1
        %p192 = scmp.lt.s32.totalorder %s189, 15
        %s193 = scalar_select %p192, %s189, 15
        %s194 = smul.addr %s191, 16
        %s195 = sadd.s32 %s193, %s194
        %s196 = smul.addr %s195, 8
        %s197 = scalar_lea.vmem %s0, %s196
        %s198 = smul.u32 8, %s22
        %s199 = smul.u32 8, %s22
        %v200 = vld [vmem:[%s197] sm:$0xff]
        %v201 = vld [vmem:[%s197 + $0x8] sm:$0xff]
        %v202 = vld [vmem:[%s197 + $0x10] sm:$0xff]
        %v203 = vld [vmem:[%s197 + $0x18] sm:$0xff]
        %v204 = vld [vmem:[%s197 + $0x20] sm:$0xff]
        %v205 = vld [vmem:[%s197 + $0x28] sm:$0xff]
        %v206 = vld [vmem:[%s197 + $0x30] sm:$0xff]
        %v207 = vld [vmem:[%s197 + $0x38] sm:$0xff]
        %v208 = vld [vmem:[%s1] sm:$0xff]
        %v209 = vld [vmem:[%s1 + $0x8] sm:$0xff]
        %v210 = vld [vmem:[%s1 + $0x10] sm:$0xff]
        %v211 = vld [vmem:[%s1 + $0x18] sm:$0xff]
        %v212 = vld [vmem:[%s1 + $0x20] sm:$0xff]
        %v213 = vld [vmem:[%s1 + $0x28] sm:$0xff]
        %v214 = vld [vmem:[%s1 + $0x30] sm:$0xff]
        %v215 = vld [vmem:[%s1 + $0x38] sm:$0xff]
        %v216 = vld [vmem:[%s2] sm:$0x1]
        %v218 = vperm.slane %v216, 0
        %vm220 = vcmask 523264
        %v222 = vsel %vm220, %v200, 0
        %v225 = vsel %vm220, %v201, 0
        %v228 = vsel %vm220, %v202, 0
        %v231 = vsel %vm220, %v203, 0
        %v234 = vsel %vm220, %v204, 0
        %v237 = vsel %vm220, %v205, 0
        %v240 = vsel %vm220, %v206, 0
        %v243 = vsel %vm220, %v207, 0
        %245 = vmatpush.msra.mxu0 0.0
        %246 = vmatpush.msra.mxu0 0.0
        %247 = vmatpush.msra.mxu0 0.0
        %248 = vmatpush.msra.mxu0 0.0
        %249 = vmatpush.msra.mxu0 0.0
        %250 = vmatpush.msra.mxu0 0.0
        %251 = vmatpush.msra.mxu0 0.0
        %252 = vmatpush.msra.mxu0 0.0
        %253 = vmatpush.msra.mxu0 %v215
        %254 = vmatpush.msra.mxu0 %v214
        %255 = vmatpush.msra.mxu0 %v213
        %256 = vmatpush.msra.mxu0 %v212
        %257 = vmatpush.msra.mxu0 %v211
        %258 = vmatpush.msra.mxu0 %v210
        %259 = vmatpush.msra.mxu0 %v209
        %260 = vmatpush.msra.mxu0 %v208
        %261 = vmatmul.f32.gmra.mxu0 %v222
        %v262 = vpop.f32.mrf.mxu0
        %v263 = vadd.f32 %v218, %v262
        %264 = vmatmul.f32.gmra.mxu0 %v225
        %v265 = vpop.f32.mrf.mxu0
        %v266 = vadd.f32 %v218, %v265
        %267 = vmatmul.f32.gmra.mxu0 %v228
        %v268 = vpop.f32.mrf.mxu0
        %v269 = vadd.f32 %v218, %v268
        %270 = vmatmul.f32.gmra.mxu0 %v231
        %v271 = vpop.f32.mrf.mxu0
        %v272 = vadd.f32 %v218, %v271
        %273 = vmatmul.f32.gmra.mxu0 %v234
        %v274 = vpop.f32.mrf.mxu0
        %v275 = vadd.f32 %v218, %v274
        %276 = vmatmul.f32.gmra.mxu0 %v237
        %v277 = vpop.f32.mrf.mxu0
        %v278 = vadd.f32 %v218, %v277
        %279 = vmatmul.f32.gmra.mxu0 %v240
        %v280 = vpop.f32.mrf.mxu0
        %v281 = vadd.f32 %v218, %v280
        %282 = vmatmul.f32.gmra.mxu0 %v243
        %v283 = vpop.f32.mrf.mxu0
        %v284 = vadd.f32 %v218, %v283
        %285 = vdwg.mxu0
        %286 = vst [vmem:[%s188] sm:$0xff] %v263
        %287 = vst [vmem:[%s188 + $0x10] sm:$0xff] %v266
        %288 = vst [vmem:[%s188 + $0x20] sm:$0xff] %v269
        %289 = vst [vmem:[%s188 + $0x30] sm:$0xff] %v272
        %290 = vst [vmem:[%s188 + $0x40] sm:$0xff] %v275
        %291 = vst [vmem:[%s188 + $0x50] sm:$0xff] %v278
        %292 = vst [vmem:[%s188 + $0x60] sm:$0xff] %v281
        %293 = vst [vmem:[%s188 + $0x70] sm:$0xff] %v284
        %s294 = scalar_lea.vmem %s188, 8 [#allocation2]
        %295 = vst [vmem:[%s294] sm:$0xff] %v263
        %296 = vst [vmem:[%s294 + $0x10] sm:$0xff] %v266
        %297 = vst [vmem:[%s294 + $0x20] sm:$0xff] %v269
        %298 = vst [vmem:[%s294 + $0x30] sm:$0xff] %v272
        %299 = vst [vmem:[%s294 + $0x40] sm:$0xff] %v275
        %300 = vst [vmem:[%s294 + $0x50] sm:$0xff] %v278
        %301 = vst [vmem:[%s294 + $0x60] sm:$0xff] %v281
        %302 = vst [vmem:[%s294 + $0x70] sm:$0xff] %v284
        %s303 = sand.u32 %s109, 1
        %s304 = scalar_lea.sflag [#allocation3], %s303
        %s305 = sand.u32 %s109, 1
        %s306 = smul.addr %s305, 128
        %s307 = scalar_lea.vmem [#allocation2], %s306
        // Predicated region
        $region33: #{tpu_custom_call.1} parent=31 // pred_check
          %p308 = pneg %p119
        $region34: #{tpu_custom_call.1} parent=31 // pred_check_branch
          %310 = sbr.rel (%p308) target = $region36
        $region35: #{tpu_custom_call.1} parent=31 // pred_region
          %s311 = smul.u32 8, %s22
          %313 = vsyncadd %s304, 0
          %s314 = smul.addr %s311, 2
          %s315 = smul.addr %s21, 32
          %s316 = sadd.s32 %s314, %s315
          %s317 = smul.addr %s316, 8
          %s318 = scalar_lea.hbm %s3, %s317
          %s319 = sshll.u32 %s307, 4
          %s320 = int_to_ptr.vmem [resolvable:$true] %s319
          %s321 = sshll.u32 %s318, 4
          %s322 = int_to_ptr.hbm [resolvable:$true] %s321
          %327 = dma.vmem_to_hbm [thread:$0]  %s320, 2048, %s322, %s304, 128, 128, 8
        $region36: #{tpu_custom_call.1} parent=31 // pred_fallthru
          _
      $region32: #{tpu_custom_call.1} parent=5 // pred_fallthru
        _
      %p328 = scmp.le.s32.totalorder 2, %s12
      // Predicated region
      $region37: #{tpu_custom_call.1} parent=5 // pred_check
        %p329 = pneg %p328
      $region38: #{tpu_custom_call.1} parent=5 // pred_check_branch
        %331 = sbr.rel (%p329) target = $region40
      $region39: #{tpu_custom_call.1} parent=5 // pred_region
        %s332 = ssub.s32 %s12, 2
        // Predicated region
        $region41: #{tpu_custom_call.1} parent=39 // pred_check
          %p333 = pneg %p125
        $region42: #{tpu_custom_call.1} parent=39 // pred_check_branch
          %335 = sbr.rel (%p333) target = $region44
        $region43: #{tpu_custom_call.1} parent=39 // pred_region
          %s336 = sand.u32 %s110, 1
          %s337 = scalar_lea.sflag [#allocation3], %s336
          %s338 = sand.u32 %s110, 1
          %s339 = smul.addr %s338, 128
          %s340 = scalar_lea.vmem [#allocation2], %s339
          %342 = dma.done %s337, 2048
        $region44: #{tpu_custom_call.1} parent=39 // pred_fallthru
          _
      $region40: #{tpu_custom_call.1} parent=5 // pred_fallthru
        _
    $region6: #{tpu_custom_call.1} parent=1 // loop_footer
      %s16 = sadd.s32 1, %s12
    $region7: #{tpu_custom_call.1} parent=1 // loop_footer_branch
      %11 = sbr.rel target = $region3
    $region8: #{tpu_custom_call.1} parent=1 // loop_exit
      _
    %343 = vsyncpa [#allocation3], 1
    %s344 = scalar_lea.sflag [#allocation3], 1
    %345 = vsyncpa %s344, 1

</llo_original>
